<compile_context>
chip_gen: v5e
topology: v5e:2x2
jax: 0.10.0
libtpu: 0.0.40
codegen_flags: <defaults>
</compile_context>

<pallas_src>
import functools
import math

import jax
import jax.numpy as jnp
from jax.experimental import pallas as pl
from jax.experimental.pallas import tpu as pltpu


# ------------------------- generation-aware caps -------------------------

@functools.lru_cache(maxsize=None)
def _caps():
    """Per-generation tile caps / VMEM budget / elementwise dtype choices."""
    try:
        kind = jax.devices()[0].device_kind.lower()
    except Exception:  # pragma: no cover - defensive
        kind = ""
    if "v6" in kind or "trillium" in kind:
        # 128 MiB VMEM, 256x256 MXU: big tiles amortize per-step overhead.
        return dict(vmem=96 * 1024 * 1024, tm=512, tn=1024, tk=1024, ti=1024,
                    tq=256, gelu_dtype=jnp.bfloat16)
    if "v5" in kind:
        # 128 MiB VMEM but no bf16 VALU and 4x128^2 MXU: keep 128-aligned tiles,
        # keep elementwise math in f32.
        return dict(vmem=64 * 1024 * 1024, tm=256, tn=512, tk=512, ti=512,
                    tq=256, gelu_dtype=jnp.float32)
    # v7x / unknown: 64 MiB VMEM per TensorCore -> modest tiles, rely on 3.2 TB/s HBM.
    return dict(vmem=48 * 1024 * 1024, tm=256, tn=512, tk=512, ti=512,
                tq=256, gelu_dtype=jnp.bfloat16)


def _round_up(x, m):
    return ((x + m - 1) // m) * m


def _row_tiling(m, cap):
    """Sublane (row) tiling: returns (tm, padded_M). tm is always a multiple of 8 and
    <= cap, so VMEM stays bounded; rows are zero-padded when no aligned divisor exists
    (padded rows are sliced off after the call)."""
    if m <= cap:
        tm = _round_up(max(m, 1), 8)
        return tm, tm
    t = (cap // 8) * 8
    while t >= 8:
        if m % t == 0:
            return t, m
        t -= 8
    tm = (cap // 8) * 8
    return tm, _round_up(m, tm)


def _lane_tile(d, cap):
    """Lane-dim tiling: largest multiple-of-128 divisor of d that is <= cap, else the
    full dim (blocks whose last dim is not a multiple of 128 must equal the full dim)."""
    if d <= cap:
        return d
    t = (cap // 128) * 128
    while t >= 128:
        if d % t == 0:
            return t
        t -= 128
    return d


def _seq_tile(s, cap):
    if s <= cap:
        return s
    t = (cap // 8) * 8
    while t >= 8:
        if s % t == 0:
            return t
        t -= 8
    return s


def _pad_rows(a, rows):
    return a if a.shape[0] == rows else jnp.pad(a, ((0, rows - a.shape[0]), (0, 0)))


def _bf16(x):
    return x if x.dtype == jnp.bfloat16 else x.astype(jnp.bfloat16)


def _f32(x):
    return x if x.dtype == jnp.float32 else x.astype(jnp.float32)


def _gelu(y):
    # TODO(synk): HF BERT uses exact erf-GELU; tanh approximation used here.
    return 0.5 * y * (1.0 + jnp.tanh(0.7978845608028654 * (y + 0.044715 * y * y * y)))


# ------------------------- Pallas kernels -------------------------

def _linear_kernel(x_ref, w_ref, b_ref, o_ref, acc_ref):
    @pl.when(pl.program_id(2) == 0)
    def _():
        acc_ref[...] = jnp.zeros_like(acc_ref)

    acc_ref[...] += jnp.dot(x_ref[...], w_ref[...],
                            preferred_element_type=jnp.float32)

    @pl.when(pl.program_id(2) == pl.num_programs(2) - 1)
    def _():
        o_ref[...] = (acc_ref[...] + b_ref[...]).astype(o_ref.dtype)


def linear(x, w, b):
    """y = x @ w + b; bf16 in / bf16 out, f32 accumulation. Used for fused QKV."""
    x, w = _bf16(x), _bf16(w)
    M, K = x.shape
    N = w.shape[1]
    caps = _caps()
    tm, Mp = _row_tiling(M, caps["tm"])
    tn = _lane_tile(N, caps["tn"])
    tk = _lane_tile(K, caps["tk"])
    xp = _pad_rows(x, Mp)
    out = pl.pallas_call(
        _linear_kernel,
        out_shape=jax.ShapeDtypeStruct((Mp, N), jnp.bfloat16),
        grid=(Mp // tm, N // tn, K // tk),
        in_specs=[
            pl.BlockSpec((tm, tk), lambda i, j, k: (i, k)),
            pl.BlockSpec((tk, tn), lambda i, j, k: (k, j)),
            pl.BlockSpec((1, tn), lambda i, j, k: (0, j)),
        ],
        out_specs=pl.BlockSpec((tm, tn), lambda i, j, k: (i, j)),
        scratch_shapes=[pltpu.VMEM((tm, tn), jnp.float32)],
        compiler_params=pltpu.CompilerParams(
            dimension_semantics=("parallel", "parallel", "arbitrary"),
            vmem_limit_bytes=caps["vmem"]),
    )(xp, w, _f32(b).reshape(1, N))
    return out if Mp == M else out[:M]


def _linear_addln_kernel(x_ref, w_ref, b_ref, res_ref, g_ref, bb_ref, o_ref,
                         acc_ref, *, eps):
    @pl.when(pl.program_id(1) == 0)
    def _():
        acc_ref[...] = jnp.zeros_like(acc_ref)

    acc_ref[...] += jnp.dot(x_ref[...], w_ref[...],
                            preferred_element_type=jnp.float32)

    @pl.when(pl.program_id(1) == pl.num_programs(1) - 1)
    def _():
        h = acc_ref[...] + b_ref[...] + res_ref[...].astype(jnp.float32)
        mu = jnp.mean(h, axis=-1, keepdims=True)
        var = jnp.mean((h - mu) * (h - mu), axis=-1, keepdims=True)
        o_ref[...] = ((h - mu) * jax.lax.rsqrt(var + eps) * g_ref[...]
                      + bb_ref[...]).astype(o_ref.dtype)


def linear_add_ln(x, w, b, residual, gamma, beta, eps=1e-12):
    """LayerNorm(x @ w + b + residual): residual-add + LN fused into the matmul
    epilogue (the whole N == H output row lives in the f32 accumulator)."""
    x, w, residual = _bf16(x), _bf16(w), _bf16(residual)
    M, K = x.shape
    N = w.shape[1]
    caps = _caps()
    tm, Mp = _row_tiling(M, caps["tm"])
    tk = _lane_tile(K, caps["tk"])
    xp, rp = _pad_rows(x, Mp), _pad_rows(residual, Mp)
    out = pl.pallas_call(
        functools.partial(_linear_addln_kernel, eps=eps),
        out_shape=jax.ShapeDtypeStruct((Mp, N), jnp.bfloat16),
        grid=(Mp // tm, K // tk),
        in_specs=[
            pl.BlockSpec((tm, tk), lambda i, k: (i, k)),
            pl.BlockSpec((tk, N), lambda i, k: (k, 0)),
            pl.BlockSpec((1, N), lambda i, k: (0, 0)),
            pl.BlockSpec((tm, N), lambda i, k: (i, 0)),   # residual (resident over k)
            pl.BlockSpec((1, N), lambda i, k: (0, 0)),
            pl.BlockSpec((1, N), lambda i, k: (0, 0)),
        ],
        out_specs=pl.BlockSpec((tm, N), lambda i, k: (i, 0)),
        scratch_shapes=[pltpu.VMEM((tm, N), jnp.float32)],
        compiler_params=pltpu.CompilerParams(
            dimension_semantics=("parallel", "arbitrary"),
            vmem_limit_bytes=caps["vmem"]),
    )(xp, w, _f32(b).reshape(1, N), rp,
      _f32(gamma).reshape(1, N), _f32(beta).reshape(1, N))
    return out if Mp == M else out[:M]


def _ffn_addln_kernel(x_ref, wi_ref, bi_ref, wo_ref, bo_ref, g_ref, bb_ref,
                      o_ref, acc_ref, *, eps, gelu_dtype):
    @pl.when(pl.program_id(1) == 0)
    def _():
        acc_ref[...] = jnp.zeros_like(acc_ref)

    h = jnp.dot(x_ref[...], wi_ref[...], preferred_element_type=jnp.float32)
    # GELU polynomial in bf16 on v6e/v7x (bf16 VALU), f32 on v5e; matmul acc stays f32.
    h = _gelu((h + bi_ref[...]).astype(gelu_dtype))
    acc_ref[...] += jnp.dot(h.astype(jnp.bfloat16), wo_ref[...],
                            preferred_element_type=jnp.float32)

    @pl.when(pl.program_id(1) == pl.num_programs(1) - 1)
    def _():
        # residual is the FFN input itself (h1) -> reuse x_ref, no extra operand.
        y = acc_ref[...] + bo_ref[...] + x_ref[...].astype(jnp.float32)
        mu = jnp.mean(y, axis=-1, keepdims=True)
        var = jnp.mean((y - mu) * (y - mu), axis=-1, keepdims=True)
        o_ref[...] = ((y - mu) * jax.lax.rsqrt(var + eps) * g_ref[...]
                      + bb_ref[...]).astype(o_ref.dtype)


def ffn_add_ln(x, wi, bi, wo, bo, gamma, beta, eps=1e-12):
    """LayerNorm(gelu(x @ wi + bi) @ wo + bo + x): the [M, I] intermediate never
    leaves VMEM; residual-add + LN fused into the last-j epilogue."""
    x, wi, wo = _bf16(x), _bf16(wi), _bf16(wo)
    M, H = x.shape
    I = wi.shape[1]
    caps = _caps()
    tm, Mp = _row_tiling(M, caps["tm"])
    ti = _lane_tile(I, caps["ti"])
    xp = _pad_rows(x, Mp)
    out = pl.pallas_call(
        functools.partial(_ffn_addln_kernel, eps=eps, gelu_dtype=caps["gelu_dtype"]),
        out_shape=jax.ShapeDtypeStruct((Mp, H), jnp.bfloat16),
        grid=(Mp // tm, I // ti),
        in_specs=[
            pl.BlockSpec((tm, H), lambda i, j: (i, 0)),   # x (also the residual)
            pl.BlockSpec((H, ti), lambda i, j: (0, j)),
            pl.BlockSpec((1, ti), lambda i, j: (0, j)),
            pl.BlockSpec((ti, H), lambda i, j: (j, 0)),
            pl.BlockSpec((1, H), lambda i, j: (0, 0)),
            pl.BlockSpec((1, H), lambda i, j: (0, 0)),
            pl.BlockSpec((1, H), lambda i, j: (0, 0)),
        ],
        out_specs=pl.BlockSpec((tm, H), lambda i, j: (i, 0)),
        scratch_shapes=[pltpu.VMEM((tm, H), jnp.float32)],
        compiler_params=pltpu.CompilerParams(
            dimension_semantics=("parallel", "arbitrary"),
            vmem_limit_bytes=caps["vmem"]),
    )(xp, wi, _f32(bi).reshape(1, I), wo, _f32(bo).reshape(1, H),
      _f32(gamma).reshape(1, H), _f32(beta).reshape(1, H))
    return out if Mp == M else out[:M]


def _emb_ln_kernel(we_ref, pe_ref, te_ref, g_ref, b_ref, o_ref, *, eps):
    h = we_ref[0] + pe_ref[...] + te_ref[...]       # sum done in-kernel (no temporaries)
    mu = jnp.mean(h, axis=-1, keepdims=True)
    var = jnp.mean((h - mu) * (h - mu), axis=-1, keepdims=True)
    o_ref[0] = ((h - mu) * jax.lax.rsqrt(var + eps) * g_ref[...]
                + b_ref[...]).astype(o_ref.dtype)


def embed_layernorm(word_emb, pos_emb, type_row, gamma, beta, eps=1e-12):
    """LayerNorm(word + pos + type); bf16 output [B, S, H]."""
    B, S, H = word_emb.shape
    caps = _caps()
    ts = _seq_tile(S, 512)
    return pl.pallas_call(
        functools.partial(_emb_ln_kernel, eps=eps),
        out_shape=jax.ShapeDtypeStruct((B, S, H), jnp.bfloat16),
        grid=(B, S // ts),
        in_specs=[
            pl.BlockSpec((1, ts, H), lambda b, s: (b, s, 0)),
            pl.BlockSpec((ts, H), lambda b, s: (s, 0)),
            pl.BlockSpec((1, H), lambda b, s: (0, 0)),
            pl.BlockSpec((1, H), lambda b, s: (0, 0)),
            pl.BlockSpec((1, H), lambda b, s: (0, 0)),
        ],
        out_specs=pl.BlockSpec((1, ts, H), lambda b, s: (b, s, 0)),
        compiler_params=pltpu.CompilerParams(
            dimension_semantics=("parallel", "parallel"),
            vmem_limit_bytes=caps["vmem"]),
    )(_f32(word_emb), _f32(pos_emb), _f32(type_row),
      _f32(gamma).reshape(1, H), _f32(beta).reshape(1, H))


def _attn_kernel(q_ref, k_ref, v_ref, m_ref, o_ref, *, n_heads, head_dim, scale):
    mask = m_ref[0]                                   # [1, S] additive f32
    # Fold 1/sqrt(dh) into the [tq, H] Q slab once (instead of per [tq, S] score tile).
    q_all = (q_ref[0] * scale).astype(jnp.bfloat16)
    # Read K/V from the ref in 128-lane-aligned slabs (heads paired when dh == 64).
    group = 2 if (head_dim * 2 == 128 and n_heads % 2 == 0) else 1
    gw = group * head_dim
    ctxs = []
    for g in range(n_heads // group):
        lo = g * gw
        k_slab = k_ref[0, :, lo:lo + gw]              # [S, gw] bf16
        v_slab = v_ref[0, :, lo:lo + gw]
        for j in range(group):
            sl = slice(j * head_dim, (j + 1) * head_dim)
            q = q_all[:, lo + j * head_dim:lo + (j + 1) * head_dim]
            s = jax.lax.dot_general(q, k_slab[:, sl], (((1,), (1,)), ((), ())),
                                    preferred_element_type=jnp.float32)
            s = s + mask                              # broadcast over query rows
            s = s - jnp.max(s, axis=-1, keepdims=True)
            p = jnp.exp(s)
            p = p * pl.reciprocal(jnp.sum(p, axis=-1, keepdims=True), approx=True)
            ctxs.append(jnp.dot(p.astype(v_slab.dtype), v_slab[:, sl],
                                preferred_element_type=jnp.float32))
    o_ref[0] = jnp.concatenate(ctxs, axis=-1).astype(o_ref.dtype)   # lane-dense store


def attention(qkv, ext_mask, n_heads):
    """qkv: [B, S, 3H] bf16 (fused Q|K|V along lanes, never split in XLA);
    ext_mask: [B, S] additive (-10000 on padding). Grid (B, S//tq)."""
    B, S, H3 = qkv.shape
    H = H3 // 3
    assert H % 128 == 0, "hidden dim must be a multiple of 128 for the QKV lane split"
    dh = H // n_heads
    caps = _caps()
    tq = _seq_tile(S, caps["tq"])
    mask = ext_mask.reshape(B, 1, S).astype(jnp.float32)
    return pl.pallas_call(
        functools.partial(_attn_kernel, n_heads=n_heads, head_dim=dh,
                          scale=1.0 / math.sqrt(dh)),
        out_shape=jax.ShapeDtypeStruct((B, S, H), jnp.bfloat16),
        grid=(B, S // tq),
        in_specs=[
            # Q / K / V are lane-blocks (width H) of the single fused QKV array:
            pl.BlockSpec((1, tq, H), lambda b, qi: (b, qi, 0)),  # Q tile
            pl.BlockSpec((1, S, H), lambda b, qi: (b, 0, 1)),    # K (resident per batch)
            pl.BlockSpec((1, S, H), lambda b, qi: (b, 0, 2)),    # V (resident per batch)
            pl.BlockSpec((1, 1, S), lambda b, qi: (b, 0, 0)),    # additive mask
        ],
        out_specs=pl.BlockSpec((1, tq, H), lambda b, qi: (b, qi, 0)),
        compiler_params=pltpu.CompilerParams(
            dimension_semantics=("parallel", "parallel"),
            vmem_limit_bytes=caps["vmem"]),
    )(qkv, qkv, qkv, mask)


# ------------------------- model (glue) -------------------------

CFG = dict(vocab_size=100, hidden=128, num_layers=2, num_heads=2,
           intermediate=512, max_position=128, type_vocab=2, num_class=4,
           dropout_rate=0.1)


def init_params(key, cfg):
    H, I, C = cfg["hidden"], cfg["intermediate"], cfg["num_class"]

    def nrm(k, shape):
        return 0.02 * jax.random.normal(k, shape, jnp.float32)

    keys = iter(jax.random.split(key, 16 + 8 * cfg["num_layers"]))
    bf = jnp.bfloat16
    p = {
        "word_emb": nrm(next(keys), (cfg["vocab_size"], H)),
        "pos_emb":  nrm(next(keys), (cfg["max_position"], H)),
        "type_emb": nrm(next(keys), (cfg["type_vocab"], H)),
        "emb_ln_g": jnp.ones((H,), jnp.float32),
        "emb_ln_b": jnp.zeros((H,), jnp.float32),
        "layers": [],
        "pooler_w": nrm(next(keys), (H, H)),
        "pooler_b": jnp.zeros((H,), jnp.float32),
        "cls1_w": nrm(next(keys), (H, H)),       # torch.nn.Linear(768, 768) analogue
        "cls1_b": jnp.zeros((H,), jnp.float32),
        "cls2_w": nrm(next(keys), (H, C)),       # torch.nn.Linear(768, num_class)
        "cls2_b": jnp.zeros((C,), jnp.float32),
    }
    for _ in range(cfg["num_layers"]):
        lp = {
            # Matmul weights stored bf16 once at init (no per-call HBM convert passes).
            "qkv_w": nrm(next(keys), (H, 3 * H)).astype(bf),
            "qkv_b": jnp.zeros((3 * H,), jnp.float32),
            "ao_w": nrm(next(keys), (H, H)).astype(bf),
            "ao_b": jnp.zeros((H,), jnp.float32),
            "ln1_g": jnp.ones((H,), jnp.float32), "ln1_b": jnp.zeros((H,), jnp.float32),
            "i_w": nrm(next(keys), (H, I)).astype(bf),
            "i_b": jnp.zeros((I,), jnp.float32),
            "o_w": nrm(next(keys), (I, H)).astype(bf),
            "o_b": jnp.zeros((H,), jnp.float32),
            "ln2_g": jnp.ones((H,), jnp.float32), "ln2_b": jnp.zeros((H,), jnp.float32),
        }
        p["layers"].append(lp)
    return p


def bert_embeddings(input_ids, params, cfg):
    B, S = input_ids.shape
    we = jnp.take(params["word_emb"], input_ids, axis=0)   # [B,S,H] f32 gather
    pe = params["pos_emb"][:S]                              # [S,H]
    te = params["type_emb"][0:1]                            # [1,H] (token_type_ids == 0 path)
    # TODO(synk): BERT-internal dropouts (embeddings/attention/output) follow eval mode.
    return embed_layernorm(we, pe, te, params["emb_ln_g"], params["emb_ln_b"])


def bert_layer(h, ext_mask, lp, cfg):
    B, S, H = h.shape
    x = h.reshape(B * S, H)                                 # bf16
    qkv = linear(x, lp["qkv_w"], lp["qkv_b"])               # [B*S, 3H] bf16 (fused Q|K|V)
    ctx = attention(qkv.reshape(B, S, 3 * H), ext_mask,
                    cfg["num_heads"]).reshape(B * S, H)     # [B*S, H] bf16
    # attn-output projection + residual + LayerNorm fused into one kernel
    h1 = linear_add_ln(ctx, lp["ao_w"], lp["ao_b"], x, lp["ln1_g"], lp["ln1_b"])
    # FFN (intermediate stays in VMEM) + residual + LayerNorm fused into one kernel
    h2 = ffn_add_ln(h1, lp["i_w"], lp["i_b"], lp["o_w"], lp["o_b"],
                    lp["ln2_g"], lp["ln2_b"])
    return h2.reshape(B, S, H)


def bert_encoder(hidden, ext_mask, params, cfg, hidden2=None, ext_mask2=None,
                 l=None, mix_layer=1000):
    if mix_layer == -1 and hidden2 is not None:
        hidden = (l * hidden + (1.0 - l) * hidden2).astype(jnp.bfloat16)
    for i in range(cfg["num_layers"]):
        lp = params["layers"][i]
        if i <= mix_layer:
            hidden = bert_layer(hidden, ext_mask, lp, cfg)
            if hidden2 is not None:
                hidden2 = bert_layer(hidden2, ext_mask2, lp, cfg)
        if i == mix_layer and hidden2 is not None:
            hidden = (l * hidden + (1.0 - l) * hidden2).astype(jnp.bfloat16)
        if i > mix_layer:
            hidden = bert_layer(hidden, ext_mask, lp, cfg)
    return hidden


def bert_model(input_ids, att_mask, params, cfg, input_ids2=None, att_mask2=None,
               l=None, mix_layer=1000):
    ext = (1.0 - att_mask.astype(jnp.float32)) * -10000.0          # [B,S]
    emb = bert_embeddings(input_ids, params, cfg)
    emb2 = ext2 = None
    if input_ids2 is not None:
        ext2 = (1.0 - att_mask2.astype(jnp.float32)) * -10000.0
        emb2 = bert_embeddings(input_ids2, params, cfg)
    seq = bert_encoder(emb, ext, params, cfg, emb2, ext2, l, mix_layer)
    # pooler: tiny (M=B) -> plain jnp, XLA fuses it better than a pallas_call
    cls = seq[:, 0, :].astype(jnp.float32)
    pooled = jnp.tanh(cls @ params["pooler_w"] + params["pooler_b"])
    return seq, pooled


def bert4classify_forward(params, cfg, input_ids, att_mask, input_ids2=None,
                          att_mask2=None, l=None, mix_layer=1000,
                          is_training=True, dropout_rng=None):
    # Note: the torch code truncates to max real length as a perf trick. We keep the
    # static (bucketed) padded length instead - the additive -10000 mask makes padded
    # positions irrelevant to the CLS token, so logits are identical and every Pallas
    # kernel keeps a single (8,128)-aligned compiled shape (no per-batch recompiles).
    if input_ids2 is not None:
        seq, _pooled = bert_model(input_ids, att_mask, params, cfg,
                                  input_ids2, att_mask2, l, mix_layer)
    else:
        seq, _pooled = bert_model(input_ids, att_mask, params, cfg)

    emb = seq[:, 0, :].astype(jnp.float32)                         # [B,H] - CLS token
    # classifier1 / classifier2: M=B rows, N<=H or N=num_class -> plain jnp (tiny)
    logits = jnp.tanh(emb @ params["cls1_w"] + params["cls1_b"])
    if is_training and cfg["dropout_rate"] > 0.0:
        if dropout_rng is None:
            dropout_rng = jax.random.PRNGKey(0)
        keep = jax.random.bernoulli(dropout_rng, 1.0 - cfg["dropout_rate"], logits.shape)
        logits = jnp.where(keep, logits / (1.0 - cfg["dropout_rate"]), 0.0)
    logits = logits @ params["cls2_w"] + params["cls2_b"]
    return logits


if __name__ == "__main__":
    cfg = CFG
    root = jax.random.PRNGKey(0)
    pkey, ikey, dkey = jax.random.split(root, 3)
    params = init_params(pkey, cfg)

    B, S = 2, 16                                   # S is a fixed padded bucket (multiple of 8)
    input_ids = jax.random.randint(ikey, (B, S), 0, cfg["vocab_size"], dtype=jnp.int32)
    # attention mask with padding: sequence lengths 12 and 10
    lengths = jnp.array([12, 10], dtype=jnp.int32)
    att_mask = (jnp.arange(S)[None, :] < lengths[:, None]).astype(jnp.int32)

    logits = bert4classify_forward(params, cfg, input_ids, att_mask,
                                   is_training=True, dropout_rng=dkey)
    logits = jax.block_until_ready(logits)
    assert logits.shape == (B, cfg["num_class"])
    assert bool(jnp.all(jnp.isfinite(logits.astype(jnp.float32))))
    print("KERNEL_OK")
</pallas_src>

<mosaic_0001>
module attributes {stable_mosaic.version = 11 : i64} {
  func.func @_emb_ln_kernel(%arg0: i32, %arg1: i32, %arg2: memref<1x16x128xf32, #tpu.memory_space<vmem>>, %arg3: memref<16x128xf32, #tpu.memory_space<vmem>>, %arg4: memref<1x128xf32, #tpu.memory_space<vmem>>, %arg5: memref<1x128xf32, #tpu.memory_space<vmem>>, %arg6: memref<1x128xf32, #tpu.memory_space<vmem>>, %arg7: memref<1x16x128xbf16, #tpu.memory_space<vmem>>) attributes {dimension_semantics = [#tpu.dimension_semantics<parallel>, #tpu.dimension_semantics<parallel>], iteration_bounds = array<i64: 2, 1>, scalar_prefetch = 0 : i64, scratch_operands = 0 : i64, tpu.core_type = #tpu.core_type<tc>, window_params = [{transform_indices = @transform_0, window_bounds = array<i64: 1, 16, 128>}, {transform_indices = @transform_1, window_bounds = array<i64: 16, 128>}, {pipeline_mode = #tpu.pipeline_mode<synchronous>, transform_indices = @transform_2, window_bounds = array<i64: 1, 128>}, {pipeline_mode = #tpu.pipeline_mode<synchronous>, transform_indices = @transform_3, window_bounds = array<i64: 1, 128>}, {pipeline_mode = #tpu.pipeline_mode<synchronous>, transform_indices = @transform_4, window_bounds = array<i64: 1, 128>}, {transform_indices = @transform_5, window_bounds = array<i64: 1, 16, 128>}]} {
    %c0 = arith.constant 0 : index
    %c0_0 = arith.constant 0 : index
    %c0_1 = arith.constant 0 : index
    %0 = vector.load %arg2[%c0, %c0_0, %c0_1] : memref<1x16x128xf32, #tpu.memory_space<vmem>>, vector<1x16x128xf32>
    %1 = vector.shape_cast %0 : vector<1x16x128xf32> to vector<16x128xf32>
    %c0_2 = arith.constant 0 : index
    %c0_3 = arith.constant 0 : index
    %2 = vector.load %arg3[%c0_2, %c0_3] : memref<16x128xf32, #tpu.memory_space<vmem>>, vector<16x128xf32>
    %3 = arith.addf %1, %2 : vector<16x128xf32>
    %c0_4 = arith.constant 0 : index
    %c0_5 = arith.constant 0 : index
    %4 = vector.load %arg4[%c0_4, %c0_5] : memref<1x128xf32, #tpu.memory_space<vmem>>, vector<1x128xf32>
    %5 = vector.broadcast %4 : vector<1x128xf32> to vector<16x128xf32>
    %6 = arith.addf %3, %5 : vector<16x128xf32>
    %cst = arith.constant dense<0.000000e+00> : vector<16xf32>
    %7 = vector.multi_reduction <add>, %6, %cst [1] : vector<16x128xf32> to vector<16xf32>
    %8 = vector.shape_cast %7 : vector<16xf32> to vector<16x1xf32>
    %cst_6 = arith.constant 1.280000e+02 : f32
    %9 = vector.broadcast %cst_6 : f32 to vector<16x1xf32>
    %10 = arith.divf %8, %9 : vector<16x1xf32>
    %11 = vector.broadcast %10 : vector<16x1xf32> to vector<16x128xf32>
    %12 = arith.subf %6, %11 : vector<16x128xf32>
    %13 = vector.broadcast %10 : vector<16x1xf32> to vector<16x128xf32>
    %14 = arith.subf %6, %13 : vector<16x128xf32>
    %15 = arith.mulf %12, %14 : vector<16x128xf32>
    %cst_7 = arith.constant dense<0.000000e+00> : vector<16xf32>
    %16 = vector.multi_reduction <add>, %15, %cst_7 [1] : vector<16x128xf32> to vector<16xf32>
    %17 = vector.shape_cast %16 : vector<16xf32> to vector<16x1xf32>
    %cst_8 = arith.constant 1.280000e+02 : f32
    %18 = vector.broadcast %cst_8 : f32 to vector<16x1xf32>
    %19 = arith.divf %17, %18 : vector<16x1xf32>
    %20 = vector.broadcast %10 : vector<16x1xf32> to vector<16x128xf32>
    %21 = arith.subf %6, %20 : vector<16x128xf32>
    %cst_9 = arith.constant 9.99999996E-13 : f32
    %22 = vector.broadcast %cst_9 : f32 to vector<16x1xf32>
    %23 = arith.addf %19, %22 : vector<16x1xf32>
    %24 = math.rsqrt %23 : vector<16x1xf32>
    %25 = vector.broadcast %24 : vector<16x1xf32> to vector<16x128xf32>
    %26 = arith.mulf %21, %25 : vector<16x128xf32>
    %c0_10 = arith.constant 0 : index
    %c0_11 = arith.constant 0 : index
    %27 = vector.load %arg5[%c0_10, %c0_11] : memref<1x128xf32, #tpu.memory_space<vmem>>, vector<1x128xf32>
    %28 = vector.broadcast %27 : vector<1x128xf32> to vector<16x128xf32>
    %29 = arith.mulf %26, %28 : vector<16x128xf32>
    %c0_12 = arith.constant 0 : index
    %c0_13 = arith.constant 0 : index
    %30 = vector.load %arg6[%c0_12, %c0_13] : memref<1x128xf32, #tpu.memory_space<vmem>>, vector<1x128xf32>
    %31 = vector.broadcast %30 : vector<1x128xf32> to vector<16x128xf32>
    %32 = arith.addf %29, %31 : vector<16x128xf32>
    %33 = arith.truncf %32 : vector<16x128xf32> to vector<16x128xbf16>
    %c0_14 = arith.constant 0 : index
    %c0_15 = arith.constant 0 : index
    %c0_16 = arith.constant 0 : index
    %34 = vector.load %arg7[%c0_14, %c0_15, %c0_16] : memref<1x16x128xbf16, #tpu.memory_space<vmem>>, vector<1x16x128xbf16>
    %35 = vector.shape_cast %34 : vector<1x16x128xbf16> to vector<16x128xbf16>
    %36 = vector.shape_cast %33 : vector<16x128xbf16> to vector<1x16x128xbf16>
    tpu.vector_store %arg7[%c0_14, %c0_15, %c0_16], %36 {strides = array<i32>} : memref<1x16x128xbf16, #tpu.memory_space<vmem>>, vector<1x16x128xbf16>,
    return
  }
  func.func @transform_0(%arg0: i32, %arg1: i32) -> (i32, i32, i32) {
    %c0_i32 = arith.constant 0 : i32
    %c0_i32_0 = arith.constant 0 : i32
    return %arg0, %arg1, %c0_i32 : i32, i32, i32
  }
  func.func @transform_1(%arg0: i32, %arg1: i32) -> (i32, i32) {
    %c0_i32 = arith.constant 0 : i32
    %c0_i32_0 = arith.constant 0 : i32
    return %arg1, %c0_i32 : i32, i32
  }
  func.func @transform_2(%arg0: i32, %arg1: i32) -> (i32, i32) {
    %c0_i32 = arith.constant 0 : i32
    %c0_i32_0 = arith.constant 0 : i32
    %c0_i32_1 = arith.constant 0 : i32
    return %c0_i32, %c0_i32_0 : i32, i32
  }
  func.func @transform_3(%arg0: i32, %arg1: i32) -> (i32, i32) {
    %c0_i32 = arith.constant 0 : i32
    %c0_i32_0 = arith.constant 0 : i32
    %c0_i32_1 = arith.constant 0 : i32
    return %c0_i32, %c0_i32_0 : i32, i32
  }
  func.func @transform_4(%arg0: i32, %arg1: i32) -> (i32, i32) {
    %c0_i32 = arith.constant 0 : i32
    %c0_i32_0 = arith.constant 0 : i32
    %c0_i32_1 = arith.constant 0 : i32
    return %c0_i32, %c0_i32_0 : i32, i32
  }
  func.func @transform_5(%arg0: i32, %arg1: i32) -> (i32, i32, i32) {
    %c0_i32 = arith.constant 0 : i32
    %c0_i32_0 = arith.constant 0 : i32
    return %arg0, %arg1, %c0_i32 : i32, i32, i32
  }
}

</mosaic_0001>

<llo_original>
// kernel: tpu_custom_call.1
$region0: #{tpu_custom_call.1}
  #allocation0 [shape = 'u32[]', space=smem, size = 0x4, offset = 0x4, fixed_abs, tag = 'smem constant byte address 0x4 - core index']
  #allocation1 [shape = 'u32[72,128]{1,0:T(1,128)}', space=vmem, size = 0x9000, scoped, tag = 'internal scratch']
  %s0 = inlined_call_operand.hbm [shape: f32[2,16,128], index: 0, kind: input, shape index: {}]
  %s1 = inlined_call_operand.hbm [shape: f32[16,128], index: 1, kind: input, shape index: {}]
  %s2 = inlined_call_operand.vmem [shape: f32[1,128], index: 2, kind: input, shape index: {}]
  %s3 = inlined_call_operand.vmem [shape: f32[1,128], index: 3, kind: input, shape index: {}]
  %s4 = inlined_call_operand.vmem [shape: f32[1,128], index: 4, kind: input, shape index: {}]
  %s5 = inlined_call_operand.hbm [shape: bf16[2,16,128], index: 5, kind: output, shape index: {}]
  %s6 = sld [smem:[#allocation0]]
  $region61: #{tpu_custom_call.1} parent=0
    _
  %s8 = ssub.s32 1, %s6
  %s9 = scalar_select 0, %s8, %s6
  $region1: #{tpu_custom_call.1} parent=0
    #allocation2 [shape = 'u8[16384]{0}', space=vmem, size = 0x4000, scoped, tag = 'input window, operand 0']
    #allocation3 [shape = 's32[2]{0}', space=sflag, size = 0x8, scoped, tag = 'scoped memory for tpu_custom_call.1']
    #allocation4 [shape = 's32[2]{0}', space=sflag, size = 0x8, scoped, tag = 'scoped memory for tpu_custom_call.1']
    #allocation5 [shape = 'u8[8192]{0}', space=vmem, size = 0x2000, scoped, tag = 'input window, operand 1, single buffered']
    #allocation6 [shape = 's32[1]{0}', space=sflag, size = 0x4, scoped, tag = 'scoped memory for tpu_custom_call.1']
    #allocation7 [shape = 'u8[8192]{0}', space=vmem, size = 0x2000, scoped, tag = 'output window, operand 0']
    %10 = vsyncpa [#allocation3], 0
    %s11 = scalar_lea.sflag [#allocation3], 1
    %12 = vsyncpa %s11, 0
    %13 = vsyncpa [#allocation6], 0
    %14 = vsyncpa [#allocation4], 0
    %s15 = scalar_lea.sflag [#allocation4], 1
    %16 = vsyncpa %s15, 0
    loop: start=0, step=1, limit=4
    $region2: #{tpu_custom_call.1} parent=1 // loop_pre_header
      _
    $region3: #{tpu_custom_call.1} parent=1 // loop_header
      %s18 = sphi 0, %s22
      %p19 = scmp.ge.s32.totalorder %s18, 4
      %s25 = sphi 0, %s37
      %s26 = sphi 0, %s33
      %s27 = sphi 0, %s25
      %s28 = sphi 0, %s26
      %s29 = sphi 0, %s27
      %s30 = sphi 0, %s28
      %s42 = sphi 0, %s44
      %s45 = sphi 0, %s42
      %s46 = sphi 0, %s45
      %s62 = sphi 0, %s46
      %s68 = sphi 0, %s70
      %s71 = sphi 0, %s68
      %s72 = sphi 0, %s71
      %s88 = sphi 0, %s72
      %s92 = sphi 0, %s92
      %s94 = sphi 0, %s92
      %s95 = sphi 0, %s94
      %s109 = sphi 0, %s95
      %s113 = sphi 0, %s113
      %s115 = sphi 0, %s113
      %s116 = sphi 0, %s115
      %s130 = sphi 0, %s116
      %s134 = sphi 0, %s134
      %s136 = sphi 0, %s134
      %s137 = sphi 0, %s136
      %s151 = sphi 0, %s137
      %s159 = sphi 0, %s161
      %s162 = sphi 0, %s159
      %s163 = sphi 0, %s162
      %s179 = sphi 0, %s163
    $region4: #{tpu_custom_call.1} parent=1 // loop_header_branch
      %21 = sbr.rel (%p19) target = $region8
    $region5: #{tpu_custom_call.1} parent=1 // loop_body
      %s23 = ssub.s32 %s18, 1
      %s24 = ssub.s32 %s18, 2
      %s31 = sadd.s32 1, %s26
      %p32 = scmp.ge.s32.totalorder %s31, 1
      %s33 = scalar_select %p32, 0, %s31
      %s34 = sadd.s32 1, %s25
      %s35 = scalar_select %p32, %s34, %s25
      %p36 = scmp.ge.s32.totalorder %s35, 2
      %s37 = scalar_select %p36, 0, %s35
      %s38 = ssub.s32 %s25, %s37
      %s39 = ssub.s32 %s26, %s33
      %s40 = sor.u32 %s38, %s39
      %p41 = scmp.eq.s32.totalorder %s40, 0
      %s43 = sadd.s32 %s42, 1
      %s44 = scalar_select %p41, %s42, %s43
      %p47 = pneg %p41
      %p48 = scmp.eq.s32.totalorder %s18, 1
      %p49 = por %p47, %p48
      %p50 = scmp.ne.s32.totalorder %s42, %s45
      %p51 = scmp.eq.s32.totalorder %s18, 0
      %p52 = por %p50, %p51
      %p53 = scmp.ne.s32.totalorder %s42, %s45
      %p54 = scmp.eq.s32.totalorder %s23, 1
      %p55 = por %p53, %p54
      %p56 = scmp.ne.s32.totalorder %s45, %s46
      %p57 = scmp.eq.s32.totalorder %s23, 0
      %p58 = por %p56, %p57
      %p59 = scmp.ne.s32.totalorder %s45, %s46
      %p60 = scmp.eq.s32.totalorder %s24, 1
      %p61 = por %p59, %p60
      %p63 = scmp.ne.s32.totalorder %s46, %s62
      %p64 = scmp.eq.s32.totalorder %s24, 0
      %p65 = por %p63, %p64
      %s66 = ssub.s32 %s26, %s33
      %p67 = scmp.eq.s32.totalorder %s66, 0
      %s69 = sadd.s32 %s68, 1
      %s70 = scalar_select %p67, %s68, %s69
      %p73 = pneg %p67
      %p74 = scmp.eq.s32.totalorder %s18, 1
      %p75 = por %p73, %p74
      %p76 = scmp.ne.s32.totalorder %s68, %s71
      %p77 = scmp.eq.s32.totalorder %s18, 0
      %p78 = por %p76, %p77
      %p79 = scmp.ne.s32.totalorder %s68, %s71
      %p80 = scmp.eq.s32.totalorder %s23, 1
      %p81 = por %p79, %p80
      %p82 = scmp.ne.s32.totalorder %s71, %s72
      %p83 = scmp.eq.s32.totalorder %s23, 0
      %p84 = por %p82, %p83
      %p85 = scmp.ne.s32.totalorder %s71, %s72
      %p86 = scmp.eq.s32.totalorder %s24, 1
      %p87 = por %p85, %p86
      %p89 = scmp.ne.s32.totalorder %s72, %s88
      %p90 = scmp.eq.s32.totalorder %s24, 0
      %p91 = por %p89, %p90
      %s93 = sadd.s32 %s92, 1
      %p96 = scmp.eq.s32.totalorder %s18, 1
      %p97 = scmp.ne.s32.totalorder %s92, %s94
      %p98 = scmp.eq.s32.totalorder %s18, 0
      %p99 = por %p97, %p98
      %p100 = scmp.ne.s32.totalorder %s92, %s94
      %p101 = scmp.eq.s32.totalorder %s23, 1
      %p102 = por %p100, %p101
      %p103 = scmp.ne.s32.totalorder %s94, %s95
      %p104 = scmp.eq.s32.totalorder %s23, 0
      %p105 = por %p103, %p104
      %p106 = scmp.ne.s32.totalorder %s94, %s95
      %p107 = scmp.eq.s32.totalorder %s24, 1
      %p108 = por %p106, %p107
      %p110 = scmp.ne.s32.totalorder %s95, %s109
      %p111 = scmp.eq.s32.totalorder %s24, 0
      %p112 = por %p110, %p111
      %s114 = sadd.s32 %s113, 1
      %p117 = scmp.eq.s32.totalorder %s18, 1
      %p118 = scmp.ne.s32.totalorder %s113, %s115
      %p119 = scmp.eq.s32.totalorder %s18, 0
      %p120 = por %p118, %p119
      %p121 = scmp.ne.s32.totalorder %s113, %s115
      %p122 = scmp.eq.s32.totalorder %s23, 1
      %p123 = por %p121, %p122
      %p124 = scmp.ne.s32.totalorder %s115, %s116
      %p125 = scmp.eq.s32.totalorder %s23, 0
      %p126 = por %p124, %p125
      %p127 = scmp.ne.s32.totalorder %s115, %s116
      %p128 = scmp.eq.s32.totalorder %s24, 1
      %p129 = por %p127, %p128
      %p131 = scmp.ne.s32.totalorder %s116, %s130
      %p132 = scmp.eq.s32.totalorder %s24, 0
      %p133 = por %p131, %p132
      %s135 = sadd.s32 %s134, 1
      %p138 = scmp.eq.s32.totalorder %s18, 1
      %p139 = scmp.ne.s32.totalorder %s134, %s136
      %p140 = scmp.eq.s32.totalorder %s18, 0
      %p141 = por %p139, %p140
      %p142 = scmp.ne.s32.totalorder %s134, %s136
      %p143 = scmp.eq.s32.totalorder %s23, 1
      %p144 = por %p142, %p143
      %p145 = scmp.ne.s32.totalorder %s136, %s137
      %p146 = scmp.eq.s32.totalorder %s23, 0
      %p147 = por %p145, %p146
      %p148 = scmp.ne.s32.totalorder %s136, %s137
      %p149 = scmp.eq.s32.totalorder %s24, 1
      %p150 = por %p148, %p149
      %p152 = scmp.ne.s32.totalorder %s137, %s151
      %p153 = scmp.eq.s32.totalorder %s24, 0
      %p154 = por %p152, %p153
      %s155 = ssub.s32 %s25, %s37
      %s156 = ssub.s32 %s26, %s33
      %s157 = sor.u32 %s155, %s156
      %p158 = scmp.eq.s32.totalorder %s157, 0
      %s160 = sadd.s32 %s159, 1
      %s161 = scalar_select %p158, %s159, %s160
      %p164 = pneg %p158
      %p165 = scmp.eq.s32.totalorder %s18, 1
      %p166 = por %p164, %p165
      %p167 = scmp.ne.s32.totalorder %s159, %s162
      %p168 = scmp.eq.s32.totalorder %s18, 0
      %p169 = por %p167, %p168
      %p170 = scmp.ne.s32.totalorder %s159, %s162
      %p171 = scmp.eq.s32.totalorder %s23, 1
      %p172 = por %p170, %p171
      %p173 = scmp.ne.s32.totalorder %s162, %s163
      %p174 = scmp.eq.s32.totalorder %s23, 0
      %p175 = por %p173, %p174
      %p176 = scmp.ne.s32.totalorder %s162, %s163
      %p177 = scmp.eq.s32.totalorder %s24, 1
      %p178 = por %p176, %p177
      %p180 = scmp.ne.s32.totalorder %s163, %s179
      %p181 = scmp.eq.s32.totalorder %s24, 0
      %p182 = por %p180, %p181
      %p183 = scmp.le.s32.totalorder 1, %s18
      %p184 = scmp.lt.s32.totalorder %s18, 3
      %p185 = pnand %p183, %p184
      %p186 = pneg %p185
      // Predicated region
      $region9: #{tpu_custom_call.1} parent=5 // pred_check
        _
      $region10: #{tpu_custom_call.1} parent=5 // pred_check_branch
        %188 = sbr.rel (%p185) target = $region12
      $region11: #{tpu_custom_call.1} parent=5 // pred_region
        %s189 = ssub.s32 %s18, 1
        // Predicated region
        $region13: #{tpu_custom_call.1} parent=11 // pred_check
          %p190 = pneg %p84
        $region14: #{tpu_custom_call.1} parent=11 // pred_check_branch
          %192 = sbr.rel (%p190) target = $region16
        $region15: #{tpu_custom_call.1} parent=11 // pred_region
          %s193 = smul.u32 2, %s28
          %195 = vsyncadd [#allocation6], 0
          %s196 = smul.addr %s193, 8
          %s197 = scalar_lea.hbm %s1, %s196
          %s198 = sshll.u32 %s197, 4
          %s199 = int_to_ptr.hbm [resolvable:$true] %s198
          %s200 = sshll.u32 [#allocation5], 4
          %s201 = int_to_ptr.vmem [resolvable:$true] %s200
          %206 = dma.hbm_to_vmem [thread:$0]  %s199, 256, %s201, [#allocation6], 128, 128, 8
        $region16: #{tpu_custom_call.1} parent=11 // pred_fallthru
          _
        // Predicated region
        $region17: #{tpu_custom_call.1} parent=11 // pred_check
          %p207 = pneg %p105
        $region18: #{tpu_custom_call.1} parent=11 // pred_check_branch
          %209 = sbr.rel (%p207) target = $region20
        $region19: #{tpu_custom_call.1} parent=11 // pred_region
          _
        $region20: #{tpu_custom_call.1} parent=11 // pred_fallthru
          _
        // Predicated region
        $region21: #{tpu_custom_call.1} parent=11 // pred_check
          %p210 = pneg %p126
        $region22: #{tpu_custom_call.1} parent=11 // pred_check_branch
          %212 = sbr.rel (%p210) target = $region24
        $region23: #{tpu_custom_call.1} parent=11 // pred_region
          _
        $region24: #{tpu_custom_call.1} parent=11 // pred_fallthru
          _
        // Predicated region
        $region25: #{tpu_custom_call.1} parent=11 // pred_check
          %p213 = pneg %p147
        $region26: #{tpu_custom_call.1} parent=11 // pred_check_branch
          %215 = sbr.rel (%p213) target = $region28
        $region27: #{tpu_custom_call.1} parent=11 // pred_region
          _
        $region28: #{tpu_custom_call.1} parent=11 // pred_fallthru
          _
      $region12: #{tpu_custom_call.1} parent=5 // pred_fallthru
        _
      %p216 = scmp.lt.s32.totalorder %s18, 2
      // Predicated region
      $region29: #{tpu_custom_call.1} parent=5 // pred_check
        %p217 = pneg %p216
      $region30: #{tpu_custom_call.1} parent=5 // pred_check_branch
        %219 = sbr.rel (%p217) target = $region32
      $region31: #{tpu_custom_call.1} parent=5 // pred_region
        // Predicated region
        $region33: #{tpu_custom_call.1} parent=31 // pred_check
          %p220 = pneg %p52
        $region34: #{tpu_custom_call.1} parent=31 // pred_check_branch
          %222 = sbr.rel (%p220) target = $region36
        $region35: #{tpu_custom_call.1} parent=31 // pred_region
          %s223 = sand.u32 %s42, 1
          %s224 = scalar_lea.sflag [#allocation3], %s223
          %s225 = sand.u32 %s42, 1
          %s226 = smul.addr %s225, 16
          %s227 = scalar_lea.vmem [#allocation2], %s226
          %s228 = smul.u32 2, %s26
          %230 = vsyncadd %s224, 0
          %s231 = smul.addr %s25, 2
          %s232 = sadd.s32 %s228, %s231
          %s233 = smul.addr %s232, 8
          %s234 = scalar_lea.hbm %s0, %s233
          %s235 = sshll.u32 %s234, 4
          %s236 = int_to_ptr.hbm [resolvable:$true] %s235
          %s237 = sshll.u32 %s227, 4
          %s238 = int_to_ptr.vmem [resolvable:$true] %s237
          %243 = dma.hbm_to_vmem [thread:$0]  %s236, 256, %s238, %s224, 128, 128, 8
        $region36: #{tpu_custom_call.1} parent=31 // pred_fallthru
          _
      $region32: #{tpu_custom_call.1} parent=5 // pred_fallthru
        _
      %p244 = scmp.le.s32.totalorder 1, %s18
      %p245 = scmp.lt.s32.totalorder %s18, 3
      %p246 = pnand %p244, %p245
      %p247 = pneg %p246
      // Predicated region
      $region37: #{tpu_custom_call.1} parent=5 // pred_check
        _
      $region38: #{tpu_custom_call.1} parent=5 // pred_check_branch
        %249 = sbr.rel (%p246) target = $region40
      $region39: #{tpu_custom_call.1} parent=5 // pred_region
        %s250 = ssub.s32 %s18, 1
        %s251 = sand.u32 %s45, 1
        %s252 = scalar_lea.sflag [#allocation3], %s251
        %s253 = sand.u32 %s45, 1
        %s254 = smul.addr %s253, 16
        %s255 = scalar_lea.vmem [#allocation2], %s254
        // Predicated region
        $region41: #{tpu_custom_call.1} parent=39 // pred_check
          %p256 = pneg %p58
        $region42: #{tpu_custom_call.1} parent=39 // pred_check_branch
          %258 = sbr.rel (%p256) target = $region44
        $region43: #{tpu_custom_call.1} parent=39 // pred_region
          %260 = dma.done %s252, 256
        $region44: #{tpu_custom_call.1} parent=39 // pred_fallthru
          _
        // Predicated region
        $region45: #{tpu_custom_call.1} parent=39 // pred_check
          %p261 = pneg %p84
        $region46: #{tpu_custom_call.1} parent=39 // pred_check_branch
          %263 = sbr.rel (%p261) target = $region48
        $region47: #{tpu_custom_call.1} parent=39 // pred_region
          %265 = dma.done [#allocation6], 256
        $region48: #{tpu_custom_call.1} parent=39 // pred_fallthru
          _
        %s266 = sand.u32 %s45, 1
        %s267 = scalar_lea.sflag [#allocation3], %s266
        %s268 = sand.u32 %s45, 1
        %s269 = smul.addr %s268, 16
        %s270 = scalar_lea.vmem [#allocation2], %s269
        %p271 = pneg %p58
        %p272 = pneg %p55
        %p273 = pneg %p84
        %p274 = pneg %p81
        %p275 = pneg %p105
        %p276 = pneg %p102
        %p277 = pneg %p126
        %p278 = pneg %p123
        %p279 = pneg %p147
        %p280 = pneg %p144
        %p281 = pneg %p175
        %p282 = pneg %p172
        %s283 = sand.u32 %s162, 1
        %s284 = scalar_lea.sflag [#allocation4], %s283
        %s285 = sand.u32 %s162, 1
        %s286 = smul.addr %s285, 8
        %s287 = scalar_lea.vmem [#allocation7], %s286
        %s288 = smul.u32 2, %s28
        %s289 = smul.u32 2, %s28
        %s290 = smul.u32 2, %s28
        %v291 = vld [vmem:[%s255] sm:$0xff]
        %v292 = vld [vmem:[%s255 + $0x8] sm:$0xff]
        %v293 = vld [vmem:[#allocation5] sm:$0xff]
        %v294 = vld [vmem:[#allocation5 + $0x8] sm:$0xff]
        %v295 = vadd.f32 %v291, %v293
        %v296 = vadd.f32 %v292, %v294
        %v297 = vld [vmem:[%s2] sm:$0x1]
        %v299 = vperm.slane %v297, 0
        %v301 = vadd.f32 %v295, %v299
        %v302 = vadd.f32 %v296, %v299
        %303 = vadd.xlane.f32.xlu0 %v301
        %v304 = vpop.xlane.xlu0 %303
        %305 = vadd.xlane.f32.xlu0 %v302
        %v306 = vpop.xlane.xlu0 %305
        %v307 = vrcp.pop 128.0
        %v308 = vmul.f32 128.0, %v307
        %v309 = vsub.f32 1.0, %v308
        %v310 = vmul.f32 %v307, %v309
        %v311 = vadd.f32 %v307, %v310
        %vm312 = vweird.f32 %v307
        %v313 = vsel %vm312, %v307, %v311
        %v314 = vmul.f32 %v304, %v313
        %v315 = vmul.f32 %v306, %v313
        %v316 = vsub.f32 %v301, %v314
        %v317 = vsub.f32 %v302, %v315
        %v318 = vmul.f32 %v316, %v316
        %v319 = vmul.f32 %v317, %v317
        %320 = vadd.xlane.f32.xlu0 %v318
        %v321 = vpop.xlane.xlu0 %320
        %322 = vadd.xlane.f32.xlu0 %v319
        %v323 = vpop.xlane.xlu0 %322
        %v324 = vmul.f32 %v321, %v313
        %v325 = vmul.f32 %v323, %v313
        %v326 = vadd.f32 %v324, 1e-12
        %v327 = vadd.f32 %v325, 1e-12
        %v328 = vrsqrt.pop %v326
        %v329 = vmul.f32 %v328, %v326
        %v330 = vmul.f32 %v329, %v328
        %v331 = vmul.f32 0.5, %v330
        %v332 = vsub.f32 1.5, %v331
        %v333 = vmul.f32 %v328, %v332
        %vm334 = vweird.f32 %v326
        %vm335 = vweird.f32 %v328
        %vm336 = vmor %vm334, %vm335
        %v337 = vsel %vm336, %v328, %v333
        %v338 = vrsqrt.pop %v327
        %v339 = vmul.f32 %v338, %v327
        %v340 = vmul.f32 %v339, %v338
        %v341 = vmul.f32 0.5, %v340
        %v342 = vsub.f32 1.5, %v341
        %v343 = vmul.f32 %v338, %v342
        %vm344 = vweird.f32 %v327
        %vm345 = vweird.f32 %v338
        %vm346 = vmor %vm344, %vm345
        %v347 = vsel %vm346, %v338, %v343
        %v348 = vmul.f32 %v316, %v337
        %v349 = vmul.f32 %v317, %v347
        %v350 = vld [vmem:[%s3] sm:$0x1]
        %v352 = vperm.slane %v350, 0
        %v354 = vmul.f32 %v348, %v352
        %v355 = vmul.f32 %v349, %v352
        %v356 = vld [vmem:[%s4] sm:$0x1]
        %v358 = vperm.slane %v356, 0
        %v360 = vadd.f32 %v354, %v358
        %v361 = vadd.f32 %v355, %v358
        %v362 = vpack.c.bf16 %v360, %v360
        %v363 = vpack.c.bf16 %v361, %v361
        %364 = vst [vmem:[%s287] sm:$0xf] %v362
        %365 = vst [vmem:[%s287 + $0x4] sm:$0xf] %v363
        %s366 = sand.u32 %s162, 1
        %s367 = scalar_lea.sflag [#allocation4], %s366
        %s368 = sand.u32 %s162, 1
        %s369 = smul.addr %s368, 8
        %s370 = scalar_lea.vmem [#allocation7], %s369
        // Predicated region
        $region49: #{tpu_custom_call.1} parent=39 // pred_check
          %p371 = pneg %p172
        $region50: #{tpu_custom_call.1} parent=39 // pred_check_branch
          %373 = sbr.rel (%p371) target = $region52
        $region51: #{tpu_custom_call.1} parent=39 // pred_region
          %s374 = smul.u32 2, %s28
          %376 = vsyncadd %s367, 0
          %s377 = smul.addr %s27, 2
          %s378 = sadd.s32 %s374, %s377
          %s379 = smul.addr %s378, 4
          %s380 = scalar_lea.hbm %s5, %s379
          %s381 = sshll.u32 %s370, 4
          %s382 = int_to_ptr.vmem [resolvable:$true] %s381
          %s383 = sshll.u32 %s380, 4
          %s384 = int_to_ptr.hbm [resolvable:$true] %s383
          %389 = dma.vmem_to_hbm [thread:$0]  %s382, 128, %s384, %s367, 64, 64, 4
        $region52: #{tpu_custom_call.1} parent=39 // pred_fallthru
          _
      $region40: #{tpu_custom_call.1} parent=5 // pred_fallthru
        _
      %p390 = scmp.le.s32.totalorder 2, %s18
      // Predicated region
      $region53: #{tpu_custom_call.1} parent=5 // pred_check
        %p391 = pneg %p390
      $region54: #{tpu_custom_call.1} parent=5 // pred_check_branch
        %393 = sbr.rel (%p391) target = $region56
      $region55: #{tpu_custom_call.1} parent=5 // pred_region
        %s394 = ssub.s32 %s18, 2
        // Predicated region
        $region57: #{tpu_custom_call.1} parent=55 // pred_check
          %p395 = pneg %p178
        $region58: #{tpu_custom_call.1} parent=55 // pred_check_branch
          %397 = sbr.rel (%p395) target = $region60
        $region59: #{tpu_custom_call.1} parent=55 // pred_region
          %s398 = sand.u32 %s163, 1
          %s399 = scalar_lea.sflag [#allocation4], %s398
          %s400 = sand.u32 %s163, 1
          %s401 = smul.addr %s400, 8
          %s402 = scalar_lea.vmem [#allocation7], %s401
          %404 = dma.done %s399, 128
        $region60: #{tpu_custom_call.1} parent=55 // pred_fallthru
          _
      $region56: #{tpu_custom_call.1} parent=5 // pred_fallthru
        _
    $region6: #{tpu_custom_call.1} parent=1 // loop_footer
      %s22 = sadd.s32 1, %s18
    $region7: #{tpu_custom_call.1} parent=1 // loop_footer_branch
      %17 = sbr.rel target = $region3
    $region8: #{tpu_custom_call.1} parent=1 // loop_exit
      _
    %405 = vsyncpa [#allocation3], 1
    %s406 = scalar_lea.sflag [#allocation3], 1
    %407 = vsyncpa %s406, 1
    %408 = vsyncpa [#allocation6], 1
    %409 = vsyncpa [#allocation4], 1
    %s410 = scalar_lea.sflag [#allocation4], 1
    %411 = vsyncpa %s410, 1

</llo_original>
